<compile_context>
chip_gen: v5e
topology: v5e:2x2
jax: 0.10.0
libtpu: 0.0.40
codegen_flags: <defaults>
</compile_context>

<pallas_src>
from functools import partial

import numpy as np

import jax
import jax.numpy as jnp
from jax import lax
from jax.experimental import pallas as pl
from jax.experimental.pallas import tpu as pltpu


# ------------------------------ helpers ------------------------------
def _vmem_capacity_bytes():
    """Physical VMEM of the attached TPU; safe fallback if query unavailable."""
    try:
        info = pltpu.get_tpu_info()
        cap = getattr(info, "vmem_capacity_bytes", None)
        if cap:
            return int(cap)
    except Exception:
        pass
    return 128 << 20


def _divisors_mult_of(L, m):
    return [t for t in range(m, L + 1, m) if L % t == 0]


def _chunk_cap(Cout):
    """Largest 128-multiple sub-chunk keeping 3 f32 intermediates ~vreg-resident."""
    cap = (192 * 1024) // (12 * max(Cout, 1))
    return max(128, (cap // 128) * 128)


def _pick_l_tile(L, footprint_fn, budget):
    """Biggest L_tile (full L, or a 128-multiple divisor of L) fitting `budget`."""
    cands = sorted(set([L] + _divisors_mult_of(L, 128)), reverse=True)
    for t in cands:
        if footprint_fn(t) <= budget:
            return t
    return cands[-1]


def _pick_l_chunk(L_tile, Cout):
    cap = _chunk_cap(Cout)
    if L_tile <= cap:
        return L_tile, 1
    divs = [t for t in _divisors_mult_of(L_tile, 128) if t <= cap]
    if not divs:
        return L_tile, 1
    lc = max(divs)
    return lc, L_tile // lc


# ------------------------------ kernel ------------------------------
def _build_kernel(has_downsample, compute_dtype, l_chunk, n_chunks):
    cd = compute_dtype

    def kernel(x_ref, w1_ref, b1_ref, w2_ref, b2_ref, *rest):
        if has_downsample:
            wd_ref, bd_ref, o_ref = rest
        else:
            (o_ref,) = rest

        # Resident weights / biases (tiny; loaded once per grid step).
        w1 = w1_ref[...]
        b1 = b1_ref[...]
        w2 = w2_ref[...]
        b2 = b2_ref[...]
        if has_downsample:
            wd = wd_ref[...]
            bd = bd_ref[...]

        def compute_chunk(start):
            xs = x_ref[0, :, pl.ds(start, l_chunk)]            # (Cin, lc) f32
            xs_mm = xs.astype(cd)                               # bf16 only for MXU

            # conv1 (1x1) + bias + ReLU : bf16 matmul, f32 accumulate
            h1 = jnp.dot(w1, xs_mm, preferred_element_type=jnp.float32)
            h1 = jnp.maximum(h1 + b1, 0.0)
            # dropout1: identity at inference

            # conv2 (1x1) + bias + ReLU
            h2 = jnp.dot(w2, h1.astype(cd), preferred_element_type=jnp.float32)
            h2 = jnp.maximum(h2 + b2, 0.0)
            # dropout2: identity at inference

            # residual (1x1 downsample if Cin != Cout, else exact f32 identity)
            if has_downsample:
                res = jnp.dot(wd, xs_mm, preferred_element_type=jnp.float32) + bd
            else:
                res = xs

            o_ref[0, :, pl.ds(start, l_chunk)] = (
                jnp.maximum(h2 + res, 0.0).astype(o_ref.dtype))

        if n_chunks == 1:
            compute_chunk(0)
        else:
            # Bound live f32 intermediates for large Cout without shrinking DMA tile.
            def body(c, carry):
                compute_chunk(pl.multiple_of(c * l_chunk, 128))
                return carry
            lax.fori_loop(0, n_chunks, body, 0, unroll=True)

    return kernel


# ------------------------------ wrapper ------------------------------
@partial(jax.jit, static_argnames=("kernel_size", "stride", "dilation",
                                   "compute_dtype", "out_dtype"))
def temporal_block_forward(x_ncl, params, kernel_size, stride, dilation,
                           compute_dtype=jnp.bfloat16, out_dtype=jnp.float32):
    """x_ncl: (N, Cin, L) float32 (PyTorch Conv1d layout). Returns (N, Cout, L)."""
    N, Cin, L = x_ncl.shape
    K = kernel_size
    if stride != 1:
        raise NotImplementedError("stride > 1 not supported (residual add would "
                                  "shape-mismatch in the PyTorch module).")
    if dilation * (K - 1) != 0:
        raise NotImplementedError("padding=0 residual add requires kernel_size == 1; "
                                  "kernel_size > 1 needs Chomp1d-style causal padding.")

    Cout = params["w1"].shape[0]
    has_downsample = "wd" in params
    if not has_downsample and Cin != Cout:
        raise ValueError(f"identity residual requires Cin == Cout, got "
                         f"Cin={Cin}, Cout={Cout} and no 'wd' in params.")

    cd = compute_dtype
    w_b = np.dtype(cd).itemsize
    out_b = np.dtype(out_dtype).itemsize

    # Layout plumbing: keep NCL, squeeze the (K=1) tap, cast WEIGHTS only.
    w1 = params["w1"][:, :, 0].astype(cd)                      # (Cout, Cin)
    w2 = params["w2"][:, :, 0].astype(cd)                      # (Cout, Cout)
    b1 = params["b1"].reshape(Cout, 1).astype(jnp.float32)
    b2 = params["b2"].reshape(Cout, 1).astype(jnp.float32)

    n_w = (2 + (1 if has_downsample else 0))
    w_bytes = ((Cin * Cout + Cout * Cout
                + (Cin * Cout if has_downsample else 0)) * w_b
               + n_w * Cout * 4)

    # Generation-aware VMEM budget (~75% of physical: 96 MiB v5e/v6e, 48 MiB v7x).
    gen_cap = int(0.75 * _vmem_capacity_bytes())

    def footprint(lt):                                         # per-step VMEM estimate
        x_blk = Cin * lt * 4                                   # f32 input, dbl-buffered
        o_blk = Cout * lt * out_b                              # output, dbl-buffered
        lc = min(lt, _chunk_cap(Cout))
        interm = (3 * Cout + Cin) * lc * 4 + Cin * lc * w_b    # h1/h2/res + x cast
        return 2 * (x_blk + o_blk) + 2 * w_bytes + interm + (1 << 20)

    L_tile = _pick_l_tile(L, footprint, int(0.8 * gen_cap))
    n_lt = L // L_tile
    # v7x has 2 TensorCores fed via the parallel grid; keep >= 2 steps when the
    # problem is big enough to matter.
    if N * n_lt < 2 and L_tile >= 1024 and L_tile % 256 == 0:
        L_tile //= 2
        n_lt = L // L_tile

    l_chunk, n_chunks = _pick_l_chunk(L_tile, Cout)

    in_specs = [
        pl.BlockSpec((1, Cin, L_tile), lambda n, l: (n, 0, l)),   # x slab (f32)
        pl.BlockSpec((Cout, Cin), lambda n, l: (0, 0)),           # w1 (resident)
        pl.BlockSpec((Cout, 1), lambda n, l: (0, 0)),             # b1
        pl.BlockSpec((Cout, Cout), lambda n, l: (0, 0)),          # w2 (resident)
        pl.BlockSpec((Cout, 1), lambda n, l: (0, 0)),             # b2
    ]
    args = [x_ncl, w1, b1, w2, b2]
    if has_downsample:
        wd = params["wd"][:, :, 0].astype(cd)                     # (Cout, Cin)
        bd = params["bd"].reshape(Cout, 1).astype(jnp.float32)
        in_specs += [
            pl.BlockSpec((Cout, Cin), lambda n, l: (0, 0)),
            pl.BlockSpec((Cout, 1), lambda n, l: (0, 0)),
        ]
        args += [wd, bd]

    flops = 2 * N * L * (Cin * Cout + Cout * Cout
                         + (Cin * Cout if has_downsample else 0))
    bytes_accessed = N * Cin * L * 4 + N * Cout * L * out_b + w_bytes
    cost = pl.CostEstimate(flops=flops, transcendentals=0,
                           bytes_accessed=bytes_accessed)

    kernel = _build_kernel(has_downsample, cd, l_chunk, n_chunks)

    return pl.pallas_call(
        kernel,
        out_shape=jax.ShapeDtypeStruct((N, Cout, L), out_dtype),
        grid_spec=pltpu.PrefetchScalarGridSpec(
            num_scalar_prefetch=0,
            grid=(N, n_lt),
            in_specs=in_specs,
            out_specs=pl.BlockSpec((1, Cout, L_tile), lambda n, l: (n, 0, l)),
        ),
        compiler_params=pltpu.CompilerParams(
            dimension_semantics=("parallel", "parallel"),
            vmem_limit_bytes=gen_cap,
        ),
        cost_estimate=cost,
    )(*args)


# ------------------------- pure-JAX reference -------------------------
def _ref_forward(x, params, kernel_size, stride, dilation,
                 compute_dtype=jnp.bfloat16):
    cd = compute_dtype

    def conv1d(inp, w, b, dil, strd):
        y = lax.conv_general_dilated(
            inp.astype(cd), w.astype(cd),
            window_strides=(strd,), padding="VALID", rhs_dilation=(dil,),
            dimension_numbers=("NCH", "OIH", "NCH"),
            preferred_element_type=jnp.float32,
        )
        return y + b.astype(jnp.float32)[None, :, None]

    out = jax.nn.relu(conv1d(x, params["w1"], params["b1"], dilation, stride))
    out = jax.nn.relu(conv1d(out, params["w2"], params["b2"], dilation, stride))
    if "wd" in params:
        res = conv1d(x, params["wd"], params["bd"], 1, 1)
    else:
        res = x.astype(jnp.float32)          # exact f32 identity residual
    return jax.nn.relu(out + res)


# ------------------------------ demo ------------------------------
if __name__ == "__main__":
    key = jax.random.PRNGKey(0)

    def u(k, shape, fan_in):
        bound = 1.0 / (fan_in ** 0.5)
        return jax.random.uniform(k, shape, jnp.float32, -bound, bound)

    def make_params(k, Cin, Cout, K):
        ks = jax.random.split(k, 6)
        p = {
            "w1": u(ks[0], (Cout, Cin, K), Cin * K),
            "b1": u(ks[1], (Cout,), Cin * K),
            "w2": u(ks[2], (Cout, Cout, K), Cout * K),
            "b2": u(ks[3], (Cout,), Cout * K),
        }
        if Cin != Cout:  # downsample 1x1 conv exists iff input_size != output_size
            p["wd"] = u(ks[4], (Cout, Cin, 1), Cin)
            p["bd"] = u(ks[5], (Cout,), Cin)
        return p

    configs = [
        # (N, Cin, Cout, L, K, stride, dilation, out_dtype, atol)
        (2, 4, 8, 1024, 1, 1, 1, jnp.float32, 1e-2),   # downsample residual, 1 L-step
        (2, 8, 8, 640, 1, 1, 2, jnp.float32, 1e-2),    # identity residual, awkward L
        (2, 8, 8, 768, 1, 1, 1, jnp.bfloat16, 5e-2),   # bf16 output path
    ]

    for idx, (N, Cin, Cout, L, K, stride, dilation, od, tol) in enumerate(configs):
        kp, kx = jax.random.split(jax.random.fold_in(key, idx))
        params = make_params(kp, Cin, Cout, K)
        x = jax.random.normal(kx, (N, Cin, L), jnp.float32)

        y = temporal_block_forward(x, params, kernel_size=K, stride=stride,
                                   dilation=dilation, out_dtype=od)
        y = jax.block_until_ready(y)

        y_ref = _ref_forward(x, params, K, stride, dilation)
        assert y.shape == y_ref.shape, (y.shape, y_ref.shape)
        y_f32 = y.astype(jnp.float32)
        max_diff = float(jnp.max(jnp.abs(y_f32 - y_ref)))
        assert jnp.allclose(y_f32, y_ref, atol=tol, rtol=tol), (
            f"config {idx}: mismatch vs reference (max abs diff {max_diff})")

    print("KERNEL_OK")
</pallas_src>

<mosaic_0001>
module attributes {stable_mosaic.version = 11 : i64} {
  func.func @kernel(%arg0: i32, %arg1: i32, %arg2: memref<1x4x1024xf32, #tpu.memory_space<vmem>>, %arg3: memref<8x4xbf16, #tpu.memory_space<vmem>>, %arg4: memref<8x1xf32, #tpu.memory_space<vmem>>, %arg5: memref<8x8xbf16, #tpu.memory_space<vmem>>, %arg6: memref<8x1xf32, #tpu.memory_space<vmem>>, %arg7: memref<8x4xbf16, #tpu.memory_space<vmem>>, %arg8: memref<8x1xf32, #tpu.memory_space<vmem>>, %arg9: memref<1x8x1024xf32, #tpu.memory_space<vmem>>) attributes {dimension_semantics = [#tpu.dimension_semantics<parallel>, #tpu.dimension_semantics<parallel>], iteration_bounds = array<i64: 2, 1>, scalar_prefetch = 0 : i64, scratch_operands = 0 : i64, tpu.core_type = #tpu.core_type<tc>, window_params = [{transform_indices = @transform_0, window_bounds = array<i64: 1, 4, 1024>}, {pipeline_mode = #tpu.pipeline_mode<synchronous>, transform_indices = @transform_1, window_bounds = array<i64: 8, 4>}, {pipeline_mode = #tpu.pipeline_mode<synchronous>, transform_indices = @transform_2, window_bounds = array<i64: 8, 1>}, {pipeline_mode = #tpu.pipeline_mode<synchronous>, transform_indices = @transform_3, window_bounds = array<i64: 8, 8>}, {pipeline_mode = #tpu.pipeline_mode<synchronous>, transform_indices = @transform_4, window_bounds = array<i64: 8, 1>}, {pipeline_mode = #tpu.pipeline_mode<synchronous>, transform_indices = @transform_5, window_bounds = array<i64: 8, 4>}, {pipeline_mode = #tpu.pipeline_mode<synchronous>, transform_indices = @transform_6, window_bounds = array<i64: 8, 1>}, {transform_indices = @transform_7, window_bounds = array<i64: 1, 8, 1024>}]} {
    %c0 = arith.constant 0 : index
    %c0_0 = arith.constant 0 : index
    %0 = vector.load %arg3[%c0, %c0_0] : memref<8x4xbf16, #tpu.memory_space<vmem>>, vector<8x4xbf16>
    %c0_1 = arith.constant 0 : index
    %c0_2 = arith.constant 0 : index
    %1 = vector.load %arg4[%c0_1, %c0_2] : memref<8x1xf32, #tpu.memory_space<vmem>>, vector<8x1xf32>
    %c0_3 = arith.constant 0 : index
    %c0_4 = arith.constant 0 : index
    %2 = vector.load %arg5[%c0_3, %c0_4] : memref<8x8xbf16, #tpu.memory_space<vmem>>, vector<8x8xbf16>
    %c0_5 = arith.constant 0 : index
    %c0_6 = arith.constant 0 : index
    %3 = vector.load %arg6[%c0_5, %c0_6] : memref<8x1xf32, #tpu.memory_space<vmem>>, vector<8x1xf32>
    %c0_7 = arith.constant 0 : index
    %c0_8 = arith.constant 0 : index
    %4 = vector.load %arg7[%c0_7, %c0_8] : memref<8x4xbf16, #tpu.memory_space<vmem>>, vector<8x4xbf16>
    %c0_9 = arith.constant 0 : index
    %c0_10 = arith.constant 0 : index
    %5 = vector.load %arg8[%c0_9, %c0_10] : memref<8x1xf32, #tpu.memory_space<vmem>>, vector<8x1xf32>
    %c0_11 = arith.constant 0 : index
    %c0_12 = arith.constant 0 : index
    %c0_13 = arith.constant 0 : index
    %6 = vector.load %arg2[%c0_11, %c0_12, %c0_13] : memref<1x4x1024xf32, #tpu.memory_space<vmem>>, vector<1x4x1024xf32>
    %7 = vector.shape_cast %6 : vector<1x4x1024xf32> to vector<4x1024xf32>
    %8 = arith.truncf %7 : vector<4x1024xf32> to vector<4x1024xbf16>
    %cst = arith.constant dense<0.000000e+00> : vector<8x1024xf32>
    %9 = tpu.matmul %0, %8, %cst {dimension_numbers = #tpu.dot_dimension_numbers<[1], [0], [0], [1], [0, 0, 1, 1], [], []>} : vector<8x4xbf16>, vector<4x1024xbf16>, vector<8x1024xf32> -> vector<8x1024xf32>
    %10 = vector.broadcast %1 : vector<8x1xf32> to vector<8x1024xf32>
    %11 = arith.addf %9, %10 : vector<8x1024xf32>
    %cst_14 = arith.constant 0.000000e+00 : f32
    %12 = vector.broadcast %cst_14 : f32 to vector<8x1024xf32>
    %13 = arith.maximumf %11, %12 : vector<8x1024xf32>
    %14 = arith.truncf %13 : vector<8x1024xf32> to vector<8x1024xbf16>
    %cst_15 = arith.constant dense<0.000000e+00> : vector<8x1024xf32>
    %15 = tpu.matmul %2, %14, %cst_15 {dimension_numbers = #tpu.dot_dimension_numbers<[1], [0], [0], [1], [0, 0, 1, 1], [], []>} : vector<8x8xbf16>, vector<8x1024xbf16>, vector<8x1024xf32> -> vector<8x1024xf32>
    %16 = vector.broadcast %3 : vector<8x1xf32> to vector<8x1024xf32>
    %17 = arith.addf %15, %16 : vector<8x1024xf32>
    %cst_16 = arith.constant 0.000000e+00 : f32
    %18 = vector.broadcast %cst_16 : f32 to vector<8x1024xf32>
    %19 = arith.maximumf %17, %18 : vector<8x1024xf32>
    %cst_17 = arith.constant dense<0.000000e+00> : vector<8x1024xf32>
    %20 = tpu.matmul %4, %8, %cst_17 {dimension_numbers = #tpu.dot_dimension_numbers<[1], [0], [0], [1], [0, 0, 1, 1], [], []>} : vector<8x4xbf16>, vector<4x1024xbf16>, vector<8x1024xf32> -> vector<8x1024xf32>
    %21 = vector.broadcast %5 : vector<8x1xf32> to vector<8x1024xf32>
    %22 = arith.addf %20, %21 : vector<8x1024xf32>
    %23 = arith.addf %19, %22 : vector<8x1024xf32>
    %cst_18 = arith.constant 0.000000e+00 : f32
    %24 = vector.broadcast %cst_18 : f32 to vector<8x1024xf32>
    %25 = arith.maximumf %23, %24 : vector<8x1024xf32>
    %c0_19 = arith.constant 0 : index
    %c0_20 = arith.constant 0 : index
    %c0_21 = arith.constant 0 : index
    %26 = vector.load %arg9[%c0_19, %c0_20, %c0_21] : memref<1x8x1024xf32, #tpu.memory_space<vmem>>, vector<1x8x1024xf32>
    %27 = vector.shape_cast %26 : vector<1x8x1024xf32> to vector<8x1024xf32>
    %28 = vector.shape_cast %25 : vector<8x1024xf32> to vector<1x8x1024xf32>
    tpu.vector_store %arg9[%c0_19, %c0_20, %c0_21], %28 {strides = array<i32>} : memref<1x8x1024xf32, #tpu.memory_space<vmem>>, vector<1x8x1024xf32>,
    return
  }
  func.func @transform_0(%arg0: i32, %arg1: i32) -> (i32, i32, i32) {
    %c0_i32 = arith.constant 0 : i32
    %c0_i32_0 = arith.constant 0 : i32
    return %arg0, %c0_i32, %arg1 : i32, i32, i32
  }
  func.func @transform_1(%arg0: i32, %arg1: i32) -> (i32, i32) {
    %c0_i32 = arith.constant 0 : i32
    %c0_i32_0 = arith.constant 0 : i32
    %c0_i32_1 = arith.constant 0 : i32
    return %c0_i32, %c0_i32_0 : i32, i32
  }
  func.func @transform_2(%arg0: i32, %arg1: i32) -> (i32, i32) {
    %c0_i32 = arith.constant 0 : i32
    %c0_i32_0 = arith.constant 0 : i32
    %c0_i32_1 = arith.constant 0 : i32
    return %c0_i32, %c0_i32_0 : i32, i32
  }
  func.func @transform_3(%arg0: i32, %arg1: i32) -> (i32, i32) {
    %c0_i32 = arith.constant 0 : i32
    %c0_i32_0 = arith.constant 0 : i32
    %c0_i32_1 = arith.constant 0 : i32
    return %c0_i32, %c0_i32_0 : i32, i32
  }
  func.func @transform_4(%arg0: i32, %arg1: i32) -> (i32, i32) {
    %c0_i32 = arith.constant 0 : i32
    %c0_i32_0 = arith.constant 0 : i32
    %c0_i32_1 = arith.constant 0 : i32
    return %c0_i32, %c0_i32_0 : i32, i32
  }
  func.func @transform_5(%arg0: i32, %arg1: i32) -> (i32, i32) {
    %c0_i32 = arith.constant 0 : i32
    %c0_i32_0 = arith.constant 0 : i32
    %c0_i32_1 = arith.constant 0 : i32
    return %c0_i32, %c0_i32_0 : i32, i32
  }
  func.func @transform_6(%arg0: i32, %arg1: i32) -> (i32, i32) {
    %c0_i32 = arith.constant 0 : i32
    %c0_i32_0 = arith.constant 0 : i32
    %c0_i32_1 = arith.constant 0 : i32
    return %c0_i32, %c0_i32_0 : i32, i32
  }
  func.func @transform_7(%arg0: i32, %arg1: i32) -> (i32, i32, i32) {
    %c0_i32 = arith.constant 0 : i32
    %c0_i32_0 = arith.constant 0 : i32
    return %arg0, %c0_i32, %arg1 : i32, i32, i32
  }
}

</mosaic_0001>

<llo_original>
// kernel: temporal_block_forward.1
$region0: #{temporal_block_forward.1}
  #allocation0 [shape = 'u32[]', space=smem, size = 0x4, offset = 0x4, fixed_abs, tag = 'smem constant byte address 0x4 - core index']
  #allocation1 [shape = 'u32[72,128]{1,0:T(1,128)}', space=vmem, size = 0x9000, scoped, tag = 'internal scratch']
  %s0 = inlined_call_operand.vmem [shape: f32[2,4,1024], index: 0, kind: input, shape index: {}]
  %s1 = inlined_call_operand.vmem [shape: bf16[8,4], index: 1, kind: input, shape index: {}]
  %s2 = inlined_call_operand.vmem [shape: f32[8,1], index: 2, kind: input, shape index: {}]
  %s3 = inlined_call_operand.vmem [shape: bf16[8,8], index: 3, kind: input, shape index: {}]
  %s4 = inlined_call_operand.vmem [shape: f32[8,1], index: 4, kind: input, shape index: {}]
  %s5 = inlined_call_operand.vmem [shape: bf16[8,4], index: 5, kind: input, shape index: {}]
  %s6 = inlined_call_operand.vmem [shape: f32[8,1], index: 6, kind: input, shape index: {}]
  %s7 = inlined_call_operand.hbm [shape: f32[2,8,1024], index: 7, kind: output, shape index: {}]
  %s8 = sld [smem:[#allocation0]]
  $region61: #{temporal_block_forward.1} parent=0
    _
  %s10 = ssub.s32 1, %s8
  %s11 = scalar_select 0, %s10, %s8
  $region1: #{temporal_block_forward.1} parent=0
    #allocation2 [shape = 'u8[65536]{0}', space=vmem, size = 0x10000, scoped, tag = 'output window, operand 0']
    #allocation3 [shape = 's32[2]{0}', space=sflag, size = 0x8, scoped, tag = 'scoped memory for temporal_block_forward.1']
    %12 = vsyncpa [#allocation3], 0
    %s13 = scalar_lea.sflag [#allocation3], 1
    %14 = vsyncpa %s13, 0
    loop: start=0, step=1, limit=4
    $region2: #{temporal_block_forward.1} parent=1 // loop_pre_header
      _
    $region3: #{temporal_block_forward.1} parent=1 // loop_header
      %s16 = sphi 0, %s20
      %p17 = scmp.ge.s32.totalorder %s16, 4
      %s23 = sphi 0, %s35
      %s24 = sphi 0, %s31
      %s25 = sphi 0, %s23
      %s26 = sphi 0, %s24
      %s27 = sphi 0, %s25
      %s28 = sphi 0, %s26
      %s40 = sphi 0, %s42
      %s43 = sphi 0, %s40
      %s44 = sphi 0, %s43
      %s60 = sphi 0, %s44
      %s64 = sphi 0, %s64
      %s66 = sphi 0, %s64
      %s67 = sphi 0, %s66
      %s81 = sphi 0, %s67
      %s85 = sphi 0, %s85
      %s87 = sphi 0, %s85
      %s88 = sphi 0, %s87
      %s102 = sphi 0, %s88
      %s106 = sphi 0, %s106
      %s108 = sphi 0, %s106
      %s109 = sphi 0, %s108
      %s123 = sphi 0, %s109
      %s127 = sphi 0, %s127
      %s129 = sphi 0, %s127
      %s130 = sphi 0, %s129
      %s144 = sphi 0, %s130
      %s148 = sphi 0, %s148
      %s150 = sphi 0, %s148
      %s151 = sphi 0, %s150
      %s165 = sphi 0, %s151
      %s169 = sphi 0, %s169
      %s171 = sphi 0, %s169
      %s172 = sphi 0, %s171
      %s186 = sphi 0, %s172
      %s194 = sphi 0, %s196
      %s197 = sphi 0, %s194
      %s198 = sphi 0, %s197
      %s214 = sphi 0, %s198
    $region4: #{temporal_block_forward.1} parent=1 // loop_header_branch
      %19 = sbr.rel (%p17) target = $region8
    $region5: #{temporal_block_forward.1} parent=1 // loop_body
      %s21 = ssub.s32 %s16, 1
      %s22 = ssub.s32 %s16, 2
      %s29 = sadd.s32 1, %s24
      %p30 = scmp.ge.s32.totalorder %s29, 1
      %s31 = scalar_select %p30, 0, %s29
      %s32 = sadd.s32 1, %s23
      %s33 = scalar_select %p30, %s32, %s23
      %p34 = scmp.ge.s32.totalorder %s33, 2
      %s35 = scalar_select %p34, 0, %s33
      %s36 = ssub.s32 %s23, %s35
      %s37 = ssub.s32 %s24, %s31
      %s38 = sor.u32 %s36, %s37
      %p39 = scmp.eq.s32.totalorder %s38, 0
      %s41 = sadd.s32 %s40, 1
      %s42 = scalar_select %p39, %s40, %s41
      %p45 = pneg %p39
      %p46 = scmp.eq.s32.totalorder %s16, 1
      %p47 = por %p45, %p46
      %p48 = scmp.ne.s32.totalorder %s40, %s43
      %p49 = scmp.eq.s32.totalorder %s16, 0
      %p50 = por %p48, %p49
      %p51 = scmp.ne.s32.totalorder %s40, %s43
      %p52 = scmp.eq.s32.totalorder %s21, 1
      %p53 = por %p51, %p52
      %p54 = scmp.ne.s32.totalorder %s43, %s44
      %p55 = scmp.eq.s32.totalorder %s21, 0
      %p56 = por %p54, %p55
      %p57 = scmp.ne.s32.totalorder %s43, %s44
      %p58 = scmp.eq.s32.totalorder %s22, 1
      %p59 = por %p57, %p58
      %p61 = scmp.ne.s32.totalorder %s44, %s60
      %p62 = scmp.eq.s32.totalorder %s22, 0
      %p63 = por %p61, %p62
      %s65 = sadd.s32 %s64, 1
      %p68 = scmp.eq.s32.totalorder %s16, 1
      %p69 = scmp.ne.s32.totalorder %s64, %s66
      %p70 = scmp.eq.s32.totalorder %s16, 0
      %p71 = por %p69, %p70
      %p72 = scmp.ne.s32.totalorder %s64, %s66
      %p73 = scmp.eq.s32.totalorder %s21, 1
      %p74 = por %p72, %p73
      %p75 = scmp.ne.s32.totalorder %s66, %s67
      %p76 = scmp.eq.s32.totalorder %s21, 0
      %p77 = por %p75, %p76
      %p78 = scmp.ne.s32.totalorder %s66, %s67
      %p79 = scmp.eq.s32.totalorder %s22, 1
      %p80 = por %p78, %p79
      %p82 = scmp.ne.s32.totalorder %s67, %s81
      %p83 = scmp.eq.s32.totalorder %s22, 0
      %p84 = por %p82, %p83
      %s86 = sadd.s32 %s85, 1
      %p89 = scmp.eq.s32.totalorder %s16, 1
      %p90 = scmp.ne.s32.totalorder %s85, %s87
      %p91 = scmp.eq.s32.totalorder %s16, 0
      %p92 = por %p90, %p91
      %p93 = scmp.ne.s32.totalorder %s85, %s87
      %p94 = scmp.eq.s32.totalorder %s21, 1
      %p95 = por %p93, %p94
      %p96 = scmp.ne.s32.totalorder %s87, %s88
      %p97 = scmp.eq.s32.totalorder %s21, 0
      %p98 = por %p96, %p97
      %p99 = scmp.ne.s32.totalorder %s87, %s88
      %p100 = scmp.eq.s32.totalorder %s22, 1
      %p101 = por %p99, %p100
      %p103 = scmp.ne.s32.totalorder %s88, %s102
      %p104 = scmp.eq.s32.totalorder %s22, 0
      %p105 = por %p103, %p104
      %s107 = sadd.s32 %s106, 1
      %p110 = scmp.eq.s32.totalorder %s16, 1
      %p111 = scmp.ne.s32.totalorder %s106, %s108
      %p112 = scmp.eq.s32.totalorder %s16, 0
      %p113 = por %p111, %p112
      %p114 = scmp.ne.s32.totalorder %s106, %s108
      %p115 = scmp.eq.s32.totalorder %s21, 1
      %p116 = por %p114, %p115
      %p117 = scmp.ne.s32.totalorder %s108, %s109
      %p118 = scmp.eq.s32.totalorder %s21, 0
      %p119 = por %p117, %p118
      %p120 = scmp.ne.s32.totalorder %s108, %s109
      %p121 = scmp.eq.s32.totalorder %s22, 1
      %p122 = por %p120, %p121
      %p124 = scmp.ne.s32.totalorder %s109, %s123
      %p125 = scmp.eq.s32.totalorder %s22, 0
      %p126 = por %p124, %p125
      %s128 = sadd.s32 %s127, 1
      %p131 = scmp.eq.s32.totalorder %s16, 1
      %p132 = scmp.ne.s32.totalorder %s127, %s129
      %p133 = scmp.eq.s32.totalorder %s16, 0
      %p134 = por %p132, %p133
      %p135 = scmp.ne.s32.totalorder %s127, %s129
      %p136 = scmp.eq.s32.totalorder %s21, 1
      %p137 = por %p135, %p136
      %p138 = scmp.ne.s32.totalorder %s129, %s130
      %p139 = scmp.eq.s32.totalorder %s21, 0
      %p140 = por %p138, %p139
      %p141 = scmp.ne.s32.totalorder %s129, %s130
      %p142 = scmp.eq.s32.totalorder %s22, 1
      %p143 = por %p141, %p142
      %p145 = scmp.ne.s32.totalorder %s130, %s144
      %p146 = scmp.eq.s32.totalorder %s22, 0
      %p147 = por %p145, %p146
      %s149 = sadd.s32 %s148, 1
      %p152 = scmp.eq.s32.totalorder %s16, 1
      %p153 = scmp.ne.s32.totalorder %s148, %s150
      %p154 = scmp.eq.s32.totalorder %s16, 0
      %p155 = por %p153, %p154
      %p156 = scmp.ne.s32.totalorder %s148, %s150
      %p157 = scmp.eq.s32.totalorder %s21, 1
      %p158 = por %p156, %p157
      %p159 = scmp.ne.s32.totalorder %s150, %s151
      %p160 = scmp.eq.s32.totalorder %s21, 0
      %p161 = por %p159, %p160
      %p162 = scmp.ne.s32.totalorder %s150, %s151
      %p163 = scmp.eq.s32.totalorder %s22, 1
      %p164 = por %p162, %p163
      %p166 = scmp.ne.s32.totalorder %s151, %s165
      %p167 = scmp.eq.s32.totalorder %s22, 0
      %p168 = por %p166, %p167
      %s170 = sadd.s32 %s169, 1
      %p173 = scmp.eq.s32.totalorder %s16, 1
      %p174 = scmp.ne.s32.totalorder %s169, %s171
      %p175 = scmp.eq.s32.totalorder %s16, 0
      %p176 = por %p174, %p175
      %p177 = scmp.ne.s32.totalorder %s169, %s171
      %p178 = scmp.eq.s32.totalorder %s21, 1
      %p179 = por %p177, %p178
      %p180 = scmp.ne.s32.totalorder %s171, %s172
      %p181 = scmp.eq.s32.totalorder %s21, 0
      %p182 = por %p180, %p181
      %p183 = scmp.ne.s32.totalorder %s171, %s172
      %p184 = scmp.eq.s32.totalorder %s22, 1
      %p185 = por %p183, %p184
      %p187 = scmp.ne.s32.totalorder %s172, %s186
      %p188 = scmp.eq.s32.totalorder %s22, 0
      %p189 = por %p187, %p188
      %s190 = ssub.s32 %s23, %s35
      %s191 = ssub.s32 %s24, %s31
      %s192 = sor.u32 %s190, %s191
      %p193 = scmp.eq.s32.totalorder %s192, 0
      %s195 = sadd.s32 %s194, 1
      %s196 = scalar_select %p193, %s194, %s195
      %p199 = pneg %p193
      %p200 = scmp.eq.s32.totalorder %s16, 1
      %p201 = por %p199, %p200
      %p202 = scmp.ne.s32.totalorder %s194, %s197
      %p203 = scmp.eq.s32.totalorder %s16, 0
      %p204 = por %p202, %p203
      %p205 = scmp.ne.s32.totalorder %s194, %s197
      %p206 = scmp.eq.s32.totalorder %s21, 1
      %p207 = por %p205, %p206
      %p208 = scmp.ne.s32.totalorder %s197, %s198
      %p209 = scmp.eq.s32.totalorder %s21, 0
      %p210 = por %p208, %p209
      %p211 = scmp.ne.s32.totalorder %s197, %s198
      %p212 = scmp.eq.s32.totalorder %s22, 1
      %p213 = por %p211, %p212
      %p215 = scmp.ne.s32.totalorder %s198, %s214
      %p216 = scmp.eq.s32.totalorder %s22, 0
      %p217 = por %p215, %p216
      %p218 = scmp.le.s32.totalorder 1, %s16
      %p219 = scmp.lt.s32.totalorder %s16, 3
      %p220 = pnand %p218, %p219
      %p221 = pneg %p220
      // Predicated region
      $region9: #{temporal_block_forward.1} parent=5 // pred_check
        _
      $region10: #{temporal_block_forward.1} parent=5 // pred_check_branch
        %223 = sbr.rel (%p220) target = $region12
      $region11: #{temporal_block_forward.1} parent=5 // pred_region
        %s224 = ssub.s32 %s16, 1
        // Predicated region
        $region13: #{temporal_block_forward.1} parent=11 // pred_check
          %p225 = pneg %p77
        $region14: #{temporal_block_forward.1} parent=11 // pred_check_branch
          %227 = sbr.rel (%p225) target = $region16
        $region15: #{temporal_block_forward.1} parent=11 // pred_region
          _
        $region16: #{temporal_block_forward.1} parent=11 // pred_fallthru
          _
        // Predicated region
        $region17: #{temporal_block_forward.1} parent=11 // pred_check
          %p228 = pneg %p98
        $region18: #{temporal_block_forward.1} parent=11 // pred_check_branch
          %230 = sbr.rel (%p228) target = $region20
        $region19: #{temporal_block_forward.1} parent=11 // pred_region
          _
        $region20: #{temporal_block_forward.1} parent=11 // pred_fallthru
          _
        // Predicated region
        $region21: #{temporal_block_forward.1} parent=11 // pred_check
          %p231 = pneg %p119
        $region22: #{temporal_block_forward.1} parent=11 // pred_check_branch
          %233 = sbr.rel (%p231) target = $region24
        $region23: #{temporal_block_forward.1} parent=11 // pred_region
          _
        $region24: #{temporal_block_forward.1} parent=11 // pred_fallthru
          _
        // Predicated region
        $region25: #{temporal_block_forward.1} parent=11 // pred_check
          %p234 = pneg %p140
        $region26: #{temporal_block_forward.1} parent=11 // pred_check_branch
          %236 = sbr.rel (%p234) target = $region28
        $region27: #{temporal_block_forward.1} parent=11 // pred_region
          _
        $region28: #{temporal_block_forward.1} parent=11 // pred_fallthru
          _
        // Predicated region
        $region29: #{temporal_block_forward.1} parent=11 // pred_check
          %p237 = pneg %p161
        $region30: #{temporal_block_forward.1} parent=11 // pred_check_branch
          %239 = sbr.rel (%p237) target = $region32
        $region31: #{temporal_block_forward.1} parent=11 // pred_region
          _
        $region32: #{temporal_block_forward.1} parent=11 // pred_fallthru
          _
        // Predicated region
        $region33: #{temporal_block_forward.1} parent=11 // pred_check
          %p240 = pneg %p182
        $region34: #{temporal_block_forward.1} parent=11 // pred_check_branch
          %242 = sbr.rel (%p240) target = $region36
        $region35: #{temporal_block_forward.1} parent=11 // pred_region
          _
        $region36: #{temporal_block_forward.1} parent=11 // pred_fallthru
          _
      $region12: #{temporal_block_forward.1} parent=5 // pred_fallthru
        _
      %p243 = scmp.lt.s32.totalorder %s16, 2
      // Predicated region
      $region37: #{temporal_block_forward.1} parent=5 // pred_check
        %p244 = pneg %p243
      $region38: #{temporal_block_forward.1} parent=5 // pred_check_branch
        %246 = sbr.rel (%p244) target = $region40
      $region39: #{temporal_block_forward.1} parent=5 // pred_region
        // Predicated region
        $region41: #{temporal_block_forward.1} parent=39 // pred_check
          %p247 = pneg %p50
        $region42: #{temporal_block_forward.1} parent=39 // pred_check_branch
          %249 = sbr.rel (%p247) target = $region44
        $region43: #{temporal_block_forward.1} parent=39 // pred_region
          %s250 = smul.u32 8, %s24
          %p251 = scmp.lt.s32.totalorder %s23, 1
          %s252 = scalar_select %p251, %s23, 1
          %p253 = scmp.lt.s32.totalorder %s250, 7
          %s254 = scalar_select %p253, %s250, 7
          %s255 = smul.addr %s252, 8
          %s256 = sadd.s32 %s254, %s255
          %s257 = smul.addr %s256, 4
          %s258 = scalar_lea.vmem %s0, %s257
          %s259 = smul.u32 8, %s24
        $region44: #{temporal_block_forward.1} parent=39 // pred_fallthru
          _
      $region40: #{temporal_block_forward.1} parent=5 // pred_fallthru
        _
      %p260 = scmp.le.s32.totalorder 1, %s16
      %p261 = scmp.lt.s32.totalorder %s16, 3
      %p262 = pnand %p260, %p261
      %p263 = pneg %p262
      // Predicated region
      $region45: #{temporal_block_forward.1} parent=5 // pred_check
        _
      $region46: #{temporal_block_forward.1} parent=5 // pred_check_branch
        %265 = sbr.rel (%p262) target = $region48
      $region47: #{temporal_block_forward.1} parent=5 // pred_region
        %s266 = ssub.s32 %s16, 1
        %s267 = smul.u32 8, %s26
        %p268 = scmp.lt.s32.totalorder %s25, 1
        %s269 = scalar_select %p268, %s25, 1
        %p270 = scmp.lt.s32.totalorder %s267, 7
        %s271 = scalar_select %p270, %s267, 7
        %s272 = smul.addr %s269, 8
        %s273 = sadd.s32 %s271, %s272
        %s274 = smul.addr %s273, 4
        %s275 = scalar_lea.vmem %s0, %s274
        %p276 = pneg %p56
        %p277 = pneg %p53
        %p278 = pneg %p77
        %p279 = pneg %p74
        %p280 = pneg %p98
        %p281 = pneg %p95
        %p282 = pneg %p119
        %p283 = pneg %p116
        %p284 = pneg %p140
        %p285 = pneg %p137
        %p286 = pneg %p161
        %p287 = pneg %p158
        %p288 = pneg %p182
        %p289 = pneg %p179
        %p290 = pneg %p210
        %p291 = pneg %p207
        %s292 = sand.u32 %s197, 1
        %s293 = scalar_lea.sflag [#allocation3], %s292
        %s294 = sand.u32 %s197, 1
        %s295 = smul.addr %s294, 64
        %s296 = scalar_lea.vmem [#allocation2], %s295
        %s297 = smul.u32 8, %s26
        %p298 = scmp.lt.s32.totalorder %s25, 1
        %s299 = scalar_select %p298, %s25, 1
        %p300 = scmp.lt.s32.totalorder %s297, 7
        %s301 = scalar_select %p300, %s297, 7
        %s302 = smul.addr %s299, 8
        %s303 = sadd.s32 %s301, %s302
        %s304 = smul.addr %s303, 4
        %s305 = scalar_lea.vmem %s0, %s304
        %s306 = smul.u32 8, %s26
        %s307 = smul.u32 8, %s26
        %v309 = vld [vmem:[%s1] sm:$0xf]
        %v310 = vld [vmem:[%s2] sm:$0xff]
        %v311 = vld [vmem:[%s3] sm:$0xf]
        %v312 = vld [vmem:[%s4] sm:$0xff]
        %v313 = vld [vmem:[%s5] sm:$0xf]
        %v314 = vld [vmem:[%s6] sm:$0xff]
        %v315 = vld [vmem:[%s305] sm:$0xff]
        %v316 = vld [vmem:[%s305 + $0x8] sm:$0xff]
        %v317 = vld [vmem:[%s305 + $0x10] sm:$0xff]
        %v318 = vld [vmem:[%s305 + $0x18] sm:$0xff]
        %323 = vst [vmem:[#allocation1] ss:$2 sm:$0xff] %v315
        %s324 = scalar_lea.vmem [#allocation1], 16
        %325 = vst [vmem:[%s324] ss:$2 sm:$0xff] %v316
        %s326 = scalar_lea.vmem [#allocation1], 32
        %327 = vst [vmem:[%s326] ss:$2 sm:$0xff] %v317
        %s328 = scalar_lea.vmem [#allocation1], 48
        %329 = vst [vmem:[%s328] ss:$2 sm:$0xff] %v318
        %v330 = vld.sshfl [vmem:[#allocation1] sm:$0xff pattern:$0x75316420]
        %v331 = vld.sshfl [vmem:[#allocation1 + $0x8] sm:$0xff pattern:$0x75316420]
        %v332 = vld.sshfl [vmem:[#allocation1 + $0x10] sm:$0xff pattern:$0x75316420]
        %v333 = vld.sshfl [vmem:[#allocation1 + $0x18] sm:$0xff pattern:$0x75316420]
        %v334 = vld.sshfl [vmem:[#allocation1 + $0x20] sm:$0xff pattern:$0x75316420]
        %v335 = vld.sshfl [vmem:[#allocation1 + $0x28] sm:$0xff pattern:$0x75316420]
        %v336 = vld.sshfl [vmem:[#allocation1 + $0x30] sm:$0xff pattern:$0x75316420]
        %v337 = vld.sshfl [vmem:[#allocation1 + $0x38] sm:$0xff pattern:$0x75316420]
        %v346 = vpack.c.bf16 %v330, %v330
        %v347 = vpack.c.bf16 %v331, %v331
        %v348 = vpack.c.bf16 %v332, %v332
        %v349 = vpack.c.bf16 %v333, %v333
        %v350 = vpack.c.bf16 %v334, %v334
        %v351 = vpack.c.bf16 %v335, %v335
        %v352 = vpack.c.bf16 %v336, %v336
        %v353 = vpack.c.bf16 %v337, %v337
        %355 = vset.pattern.permute.xlu0 0
        %356 = vperm.xlu0 %355, %v310
        %v357 = vpop.permute.xlu0 %356
        %vm359 = vcmask 31744
        %v361 = vsel %vm359, %v309, 0
        %vm363 = vcmask 1041408
        %v365 = vsel %vm363, %v346, 0
        %v368 = vsel %vm363, %v347, 0
        %v371 = vsel %vm363, %v348, 0
        %v374 = vsel %vm363, %v349, 0
        %v377 = vsel %vm363, %v350, 0
        %v380 = vsel %vm363, %v351, 0
        %v383 = vsel %vm363, %v352, 0
        %v386 = vsel %vm363, %v353, 0
        %388 = vmatpush.bf16.msra.mxu0 0
        %389 = vmatpush.bf16.msra.mxu0 0
        %390 = vmatpush.bf16.msra.mxu0 0
        %391 = vmatpush.bf16.msra.mxu0 0
        %392 = vmatpush.bf16.msra.mxu0 0
        %393 = vmatpush.bf16.msra.mxu0 0
        %394 = vmatpush.bf16.msra.mxu0 0
        %395 = vmatpush.bf16.msra.mxu0 %v365
        %396 = vmatmul.bf16.gmra.mxu0 %v361
        %v397 = vpop.f32.mrf.mxu0
        %v398 = vadd.f32 %v357, %v397
        %v399 = vpop.f32.mrf.mxu0
        %400 = vdwg.mxu0
        %401 = vmatpush.bf16.msra.mxu0 0
        %402 = vmatpush.bf16.msra.mxu0 0
        %403 = vmatpush.bf16.msra.mxu0 0
        %404 = vmatpush.bf16.msra.mxu0 0
        %405 = vmatpush.bf16.msra.mxu0 0
        %406 = vmatpush.bf16.msra.mxu0 0
        %407 = vmatpush.bf16.msra.mxu0 0
        %408 = vmatpush.bf16.msra.mxu0 %v368
        %409 = vmatmul.bf16.gmra.mxu0 %v361
        %v410 = vpop.f32.mrf.mxu0
        %v411 = vadd.f32 %v357, %v410
        %v412 = vpop.f32.mrf.mxu0
        %413 = vdwg.mxu0
        %414 = vmatpush.bf16.msra.mxu0 0
        %415 = vmatpush.bf16.msra.mxu0 0
        %416 = vmatpush.bf16.msra.mxu0 0
        %417 = vmatpush.bf16.msra.mxu0 0
        %418 = vmatpush.bf16.msra.mxu0 0
        %419 = vmatpush.bf16.msra.mxu0 0
        %420 = vmatpush.bf16.msra.mxu0 0
        %421 = vmatpush.bf16.msra.mxu0 %v371
        %422 = vmatmul.bf16.gmra.mxu0 %v361
        %v423 = vpop.f32.mrf.mxu0
        %v424 = vadd.f32 %v357, %v423
        %v425 = vpop.f32.mrf.mxu0
        %426 = vdwg.mxu0
        %427 = vmatpush.bf16.msra.mxu0 0
        %428 = vmatpush.bf16.msra.mxu0 0
        %429 = vmatpush.bf16.msra.mxu0 0
        %430 = vmatpush.bf16.msra.mxu0 0
        %431 = vmatpush.bf16.msra.mxu0 0
        %432 = vmatpush.bf16.msra.mxu0 0
        %433 = vmatpush.bf16.msra.mxu0 0
        %434 = vmatpush.bf16.msra.mxu0 %v374
        %435 = vmatmul.bf16.gmra.mxu0 %v361
        %v436 = vpop.f32.mrf.mxu0
        %v437 = vadd.f32 %v357, %v436
        %v438 = vpop.f32.mrf.mxu0
        %439 = vdwg.mxu0
        %440 = vmatpush.bf16.msra.mxu0 0
        %441 = vmatpush.bf16.msra.mxu0 0
        %442 = vmatpush.bf16.msra.mxu0 0
        %443 = vmatpush.bf16.msra.mxu0 0
        %444 = vmatpush.bf16.msra.mxu0 0
        %445 = vmatpush.bf16.msra.mxu0 0
        %446 = vmatpush.bf16.msra.mxu0 0
        %447 = vmatpush.bf16.msra.mxu0 %v377
        %448 = vmatmul.bf16.gmra.mxu0 %v361
        %v449 = vpop.f32.mrf.mxu0
        %v450 = vadd.f32 %v357, %v449
        %v451 = vpop.f32.mrf.mxu0
        %452 = vdwg.mxu0
        %453 = vmatpush.bf16.msra.mxu0 0
        %454 = vmatpush.bf16.msra.mxu0 0
        %455 = vmatpush.bf16.msra.mxu0 0
        %456 = vmatpush.bf16.msra.mxu0 0
        %457 = vmatpush.bf16.msra.mxu0 0
        %458 = vmatpush.bf16.msra.mxu0 0
        %459 = vmatpush.bf16.msra.mxu0 0
        %460 = vmatpush.bf16.msra.mxu0 %v380
        %461 = vmatmul.bf16.gmra.mxu0 %v361
        %v462 = vpop.f32.mrf.mxu0
        %v463 = vadd.f32 %v357, %v462
        %v464 = vpop.f32.mrf.mxu0
        %465 = vdwg.mxu0
        %466 = vmatpush.bf16.msra.mxu0 0
        %467 = vmatpush.bf16.msra.mxu0 0
        %468 = vmatpush.bf16.msra.mxu0 0
        %469 = vmatpush.bf16.msra.mxu0 0
        %470 = vmatpush.bf16.msra.mxu0 0
        %471 = vmatpush.bf16.msra.mxu0 0
        %472 = vmatpush.bf16.msra.mxu0 0
        %473 = vmatpush.bf16.msra.mxu0 %v383
        %474 = vmatmul.bf16.gmra.mxu0 %v361
        %v475 = vpop.f32.mrf.mxu0
        %v476 = vadd.f32 %v357, %v475
        %v477 = vpop.f32.mrf.mxu0
        %478 = vdwg.mxu0
        %479 = vmatpush.bf16.msra.mxu0 0
        %480 = vmatpush.bf16.msra.mxu0 0
        %481 = vmatpush.bf16.msra.mxu0 0
        %482 = vmatpush.bf16.msra.mxu0 0
        %483 = vmatpush.bf16.msra.mxu0 0
        %484 = vmatpush.bf16.msra.mxu0 0
        %485 = vmatpush.bf16.msra.mxu0 0
        %486 = vmatpush.bf16.msra.mxu0 %v386
        %487 = vmatmul.bf16.gmra.mxu0 %v361
        %v488 = vpop.f32.mrf.mxu0
        %v489 = vadd.f32 %v357, %v488
        %v490 = vpop.f32.mrf.mxu0
        %491 = vdwg.mxu0
        %v492 = vmax.f32 %v398, 0.0
        %v493 = vmax.f32 %v411, 0.0
        %v494 = vmax.f32 %v424, 0.0
        %v495 = vmax.f32 %v437, 0.0
        %v496 = vmax.f32 %v450, 0.0
        %v497 = vmax.f32 %v463, 0.0
        %v498 = vmax.f32 %v476, 0.0
        %v499 = vmax.f32 %v489, 0.0
        %v500 = vpack.c.bf16 %v492, %v492
        %v501 = vpack.c.bf16 %v493, %v493
        %v502 = vpack.c.bf16 %v494, %v494
        %v503 = vpack.c.bf16 %v495, %v495
        %v504 = vpack.c.bf16 %v496, %v496
        %v505 = vpack.c.bf16 %v497, %v497
        %v506 = vpack.c.bf16 %v498, %v498
        %v507 = vpack.c.bf16 %v499, %v499
        %509 = vset.pattern.permute.xlu0 0
        %510 = vperm.xlu0 %509, %v312
        %v511 = vpop.permute.xlu0 %510
        %vm513 = vcmask 64512
        %v515 = vsel %vm513, %v311, 0
        %vm517 = vcmask 1043456
        %v519 = vsel %vm517, %v500, 0
        %v522 = vsel %vm517, %v501, 0
        %v525 = vsel %vm517, %v502, 0
        %v528 = vsel %vm517, %v503, 0
        %v531 = vsel %vm517, %v504, 0
        %v534 = vsel %vm517, %v505, 0
        %v537 = vsel %vm517, %v506, 0
        %v540 = vsel %vm517, %v507, 0
        %542 = vmatpush.bf16.msra.mxu0 0
        %543 = vmatpush.bf16.msra.mxu0 0
        %544 = vmatpush.bf16.msra.mxu0 0
        %545 = vmatpush.bf16.msra.mxu0 0
        %546 = vmatpush.bf16.msra.mxu0 0
        %547 = vmatpush.bf16.msra.mxu0 0
        %548 = vmatpush.bf16.msra.mxu0 0
        %549 = vmatpush.bf16.msra.mxu0 %v519
        %550 = vmatmul.bf16.gmra.mxu0 %v515
        %v551 = vpop.f32.mrf.mxu0
        %v552 = vadd.f32 %v511, %v551
        %v553 = vpop.f32.mrf.mxu0
        %554 = vdwg.mxu0
        %555 = vmatpush.bf16.msra.mxu0 0
        %556 = vmatpush.bf16.msra.mxu0 0
        %557 = vmatpush.bf16.msra.mxu0 0
        %558 = vmatpush.bf16.msra.mxu0 0
        %559 = vmatpush.bf16.msra.mxu0 0
        %560 = vmatpush.bf16.msra.mxu0 0
        %561 = vmatpush.bf16.msra.mxu0 0
        %562 = vmatpush.bf16.msra.mxu0 %v522
        %563 = vmatmul.bf16.gmra.mxu0 %v515
        %v564 = vpop.f32.mrf.mxu0
        %v565 = vadd.f32 %v511, %v564
        %v566 = vpop.f32.mrf.mxu0
        %567 = vdwg.mxu0
        %568 = vmatpush.bf16.msra.mxu0 0
        %569 = vmatpush.bf16.msra.mxu0 0
        %570 = vmatpush.bf16.msra.mxu0 0
        %571 = vmatpush.bf16.msra.mxu0 0
        %572 = vmatpush.bf16.msra.mxu0 0
        %573 = vmatpush.bf16.msra.mxu0 0
        %574 = vmatpush.bf16.msra.mxu0 0
        %575 = vmatpush.bf16.msra.mxu0 %v525
        %576 = vmatmul.bf16.gmra.mxu0 %v515
        %v577 = vpop.f32.mrf.mxu0
        %v578 = vadd.f32 %v511, %v577
        %v579 = vpop.f32.mrf.mxu0
        %580 = vdwg.mxu0
        %581 = vmatpush.bf16.msra.mxu0 0
        %582 = vmatpush.bf16.msra.mxu0 0
        %583 = vmatpush.bf16.msra.mxu0 0
        %584 = vmatpush.bf16.msra.mxu0 0
        %585 = vmatpush.bf16.msra.mxu0 0
        %586 = vmatpush.bf16.msra.mxu0 0
        %587 = vmatpush.bf16.msra.mxu0 0
        %588 = vmatpush.bf16.msra.mxu0 %v528
        %589 = vmatmul.bf16.gmra.mxu0 %v515
        %v590 = vpop.f32.mrf.mxu0
        %v591 = vadd.f32 %v511, %v590
        %v592 = vpop.f32.mrf.mxu0
        %593 = vdwg.mxu0
        %594 = vmatpush.bf16.msra.mxu0 0
        %595 = vmatpush.bf16.msra.mxu0 0
        %596 = vmatpush.bf16.msra.mxu0 0
        %597 = vmatpush.bf16.msra.mxu0 0
        %598 = vmatpush.bf16.msra.mxu0 0
        %599 = vmatpush.bf16.msra.mxu0 0
        %600 = vmatpush.bf16.msra.mxu0 0
        %601 = vmatpush.bf16.msra.mxu0 %v531
        %602 = vmatmul.bf16.gmra.mxu0 %v515
        %v603 = vpop.f32.mrf.mxu0
        %v604 = vadd.f32 %v511, %v603
        %v605 = vpop.f32.mrf.mxu0
        %606 = vdwg.mxu0
        %607 = vmatpush.bf16.msra.mxu0 0
        %608 = vmatpush.bf16.msra.mxu0 0
        %609 = vmatpush.bf16.msra.mxu0 0
        %610 = vmatpush.bf16.msra.mxu0 0
        %611 = vmatpush.bf16.msra.mxu0 0
        %612 = vmatpush.bf16.msra.mxu0 0
        %613 = vmatpush.bf16.msra.mxu0 0
        %614 = vmatpush.bf16.msra.mxu0 %v534
        %615 = vmatmul.bf16.gmra.mxu0 %v515
        %v616 = vpop.f32.mrf.mxu0
        %v617 = vadd.f32 %v511, %v616
        %v618 = vpop.f32.mrf.mxu0
        %619 = vdwg.mxu0
        %620 = vmatpush.bf16.msra.mxu0 0
        %621 = vmatpush.bf16.msra.mxu0 0
        %622 = vmatpush.bf16.msra.mxu0 0
        %623 = vmatpush.bf16.msra.mxu0 0
        %624 = vmatpush.bf16.msra.mxu0 0
        %625 = vmatpush.bf16.msra.mxu0 0
        %626 = vmatpush.bf16.msra.mxu0 0
        %627 = vmatpush.bf16.msra.mxu0 %v537
        %628 = vmatmul.bf16.gmra.mxu0 %v515
        %v629 = vpop.f32.mrf.mxu0
        %v630 = vadd.f32 %v511, %v629
        %v631 = vpop.f32.mrf.mxu0
        %632 = vdwg.mxu0
        %633 = vmatpush.bf16.msra.mxu0 0
        %634 = vmatpush.bf16.msra.mxu0 0
        %635 = vmatpush.bf16.msra.mxu0 0
        %636 = vmatpush.bf16.msra.mxu0 0
        %637 = vmatpush.bf16.msra.mxu0 0
        %638 = vmatpush.bf16.msra.mxu0 0
        %639 = vmatpush.bf16.msra.mxu0 0
        %640 = vmatpush.bf16.msra.mxu0 %v540
        %641 = vmatmul.bf16.gmra.mxu0 %v515
        %v642 = vpop.f32.mrf.mxu0
        %v643 = vadd.f32 %v511, %v642
        %v644 = vpop.f32.mrf.mxu0
        %645 = vdwg.mxu0
        %v646 = vmax.f32 %v552, 0.0
        %v647 = vmax.f32 %v565, 0.0
        %v648 = vmax.f32 %v578, 0.0
        %v649 = vmax.f32 %v591, 0.0
        %v650 = vmax.f32 %v604, 0.0
        %v651 = vmax.f32 %v617, 0.0
        %v652 = vmax.f32 %v630, 0.0
        %v653 = vmax.f32 %v643, 0.0
        %655 = vset.pattern.permute.xlu0 0
        %656 = vperm.xlu0 %655, %v314
        %v657 = vpop.permute.xlu0 %656
        %v660 = vsel %vm359, %v313, 0
        %662 = vmatpush.bf16.msra.mxu0 0
        %663 = vmatpush.bf16.msra.mxu0 0
        %664 = vmatpush.bf16.msra.mxu0 0
        %665 = vmatpush.bf16.msra.mxu0 0
        %666 = vmatpush.bf16.msra.mxu0 0
        %667 = vmatpush.bf16.msra.mxu0 0
        %668 = vmatpush.bf16.msra.mxu0 0
        %669 = vmatpush.bf16.msra.mxu0 %v365
        %670 = vmatmul.bf16.gmra.mxu0 %v660
        %v671 = vpop.f32.mrf.mxu0
        %v672 = vadd.f32 %v657, %v671
        %v673 = vpop.f32.mrf.mxu0
        %674 = vdwg.mxu0
        %675 = vmatpush.bf16.msra.mxu0 0
        %676 = vmatpush.bf16.msra.mxu0 0
        %677 = vmatpush.bf16.msra.mxu0 0
        %678 = vmatpush.bf16.msra.mxu0 0
        %679 = vmatpush.bf16.msra.mxu0 0
        %680 = vmatpush.bf16.msra.mxu0 0
        %681 = vmatpush.bf16.msra.mxu0 0
        %682 = vmatpush.bf16.msra.mxu0 %v368
        %683 = vmatmul.bf16.gmra.mxu0 %v660
        %v684 = vpop.f32.mrf.mxu0
        %v685 = vadd.f32 %v657, %v684
        %v686 = vpop.f32.mrf.mxu0
        %687 = vdwg.mxu0
        %688 = vmatpush.bf16.msra.mxu0 0
        %689 = vmatpush.bf16.msra.mxu0 0
        %690 = vmatpush.bf16.msra.mxu0 0
        %691 = vmatpush.bf16.msra.mxu0 0
        %692 = vmatpush.bf16.msra.mxu0 0
        %693 = vmatpush.bf16.msra.mxu0 0
        %694 = vmatpush.bf16.msra.mxu0 0
        %695 = vmatpush.bf16.msra.mxu0 %v371
        %696 = vmatmul.bf16.gmra.mxu0 %v660
        %v697 = vpop.f32.mrf.mxu0
        %v698 = vadd.f32 %v657, %v697
        %v699 = vpop.f32.mrf.mxu0
        %700 = vdwg.mxu0
        %701 = vmatpush.bf16.msra.mxu0 0
        %702 = vmatpush.bf16.msra.mxu0 0
        %703 = vmatpush.bf16.msra.mxu0 0
        %704 = vmatpush.bf16.msra.mxu0 0
        %705 = vmatpush.bf16.msra.mxu0 0
        %706 = vmatpush.bf16.msra.mxu0 0
        %707 = vmatpush.bf16.msra.mxu0 0
        %708 = vmatpush.bf16.msra.mxu0 %v374
        %709 = vmatmul.bf16.gmra.mxu0 %v660
        %v710 = vpop.f32.mrf.mxu0
        %v711 = vadd.f32 %v657, %v710
        %v712 = vpop.f32.mrf.mxu0
        %713 = vdwg.mxu0
        %714 = vmatpush.bf16.msra.mxu0 0
        %715 = vmatpush.bf16.msra.mxu0 0
        %716 = vmatpush.bf16.msra.mxu0 0
        %717 = vmatpush.bf16.msra.mxu0 0
        %718 = vmatpush.bf16.msra.mxu0 0
        %719 = vmatpush.bf16.msra.mxu0 0
        %720 = vmatpush.bf16.msra.mxu0 0
        %721 = vmatpush.bf16.msra.mxu0 %v377
        %722 = vmatmul.bf16.gmra.mxu0 %v660
        %v723 = vpop.f32.mrf.mxu0
        %v724 = vadd.f32 %v657, %v723
        %v725 = vpop.f32.mrf.mxu0
        %726 = vdwg.mxu0
        %727 = vmatpush.bf16.msra.mxu0 0
        %728 = vmatpush.bf16.msra.mxu0 0
        %729 = vmatpush.bf16.msra.mxu0 0
        %730 = vmatpush.bf16.msra.mxu0 0
        %731 = vmatpush.bf16.msra.mxu0 0
        %732 = vmatpush.bf16.msra.mxu0 0
        %733 = vmatpush.bf16.msra.mxu0 0
        %734 = vmatpush.bf16.msra.mxu0 %v380
        %735 = vmatmul.bf16.gmra.mxu0 %v660
        %v736 = vpop.f32.mrf.mxu0
        %v737 = vadd.f32 %v657, %v736
        %v738 = vpop.f32.mrf.mxu0
        %739 = vdwg.mxu0
        %740 = vmatpush.bf16.msra.mxu0 0
        %741 = vmatpush.bf16.msra.mxu0 0
        %742 = vmatpush.bf16.msra.mxu0 0
        %743 = vmatpush.bf16.msra.mxu0 0
        %744 = vmatpush.bf16.msra.mxu0 0
        %745 = vmatpush.bf16.msra.mxu0 0
        %746 = vmatpush.bf16.msra.mxu0 0
        %747 = vmatpush.bf16.msra.mxu0 %v383
        %748 = vmatmul.bf16.gmra.mxu0 %v660
        %v749 = vpop.f32.mrf.mxu0
        %v750 = vadd.f32 %v657, %v749
        %v751 = vpop.f32.mrf.mxu0
        %752 = vdwg.mxu0
        %753 = vmatpush.bf16.msra.mxu0 0
        %754 = vmatpush.bf16.msra.mxu0 0
        %755 = vmatpush.bf16.msra.mxu0 0
        %756 = vmatpush.bf16.msra.mxu0 0
        %757 = vmatpush.bf16.msra.mxu0 0
        %758 = vmatpush.bf16.msra.mxu0 0
        %759 = vmatpush.bf16.msra.mxu0 0
        %760 = vmatpush.bf16.msra.mxu0 %v386
        %761 = vmatmul.bf16.gmra.mxu0 %v660
        %v762 = vpop.f32.mrf.mxu0
        %v763 = vadd.f32 %v657, %v762
        %v764 = vpop.f32.mrf.mxu0
        %765 = vdwg.mxu0
        %v766 = vadd.f32 %v646, %v672
        %v767 = vadd.f32 %v647, %v685
        %v768 = vadd.f32 %v648, %v698
        %v769 = vadd.f32 %v649, %v711
        %v770 = vadd.f32 %v650, %v724
        %v771 = vadd.f32 %v651, %v737
        %v772 = vadd.f32 %v652, %v750
        %v773 = vadd.f32 %v653, %v763
        %v774 = vmax.f32 %v766, 0.0
        %v775 = vmax.f32 %v767, 0.0
        %v776 = vmax.f32 %v768, 0.0
        %v777 = vmax.f32 %v769, 0.0
        %v778 = vmax.f32 %v770, 0.0
        %v779 = vmax.f32 %v771, 0.0
        %v780 = vmax.f32 %v772, 0.0
        %v781 = vmax.f32 %v773, 0.0
        %782 = vst [vmem:[%s296] sm:$0xff] %v774
        %783 = vst [vmem:[%s296 + $0x8] sm:$0xff] %v775
        %784 = vst [vmem:[%s296 + $0x10] sm:$0xff] %v776
        %785 = vst [vmem:[%s296 + $0x18] sm:$0xff] %v777
        %786 = vst [vmem:[%s296 + $0x20] sm:$0xff] %v778
        %787 = vst [vmem:[%s296 + $0x28] sm:$0xff] %v779
        %788 = vst [vmem:[%s296 + $0x30] sm:$0xff] %v780
        %789 = vst [vmem:[%s296 + $0x38] sm:$0xff] %v781
        %s790 = sand.u32 %s197, 1
        %s791 = scalar_lea.sflag [#allocation3], %s790
        %s792 = sand.u32 %s197, 1
        %s793 = smul.addr %s792, 64
        %s794 = scalar_lea.vmem [#allocation2], %s793
        // Predicated region
        $region49: #{temporal_block_forward.1} parent=47 // pred_check
          %p795 = pneg %p207
        $region50: #{temporal_block_forward.1} parent=47 // pred_check_branch
          %797 = sbr.rel (%p795) target = $region52
        $region51: #{temporal_block_forward.1} parent=47 // pred_region
          %s798 = smul.u32 8, %s26
          %800 = vsyncadd %s791, 0
          %s801 = smul.addr %s25, 8
          %s802 = sadd.s32 %s798, %s801
          %s803 = smul.addr %s802, 8
          %s804 = scalar_lea.hbm %s7, %s803
          %s806 = sshll.u32 %s794, 4
          %s807 = int_to_ptr.vmem [resolvable:$true] %s806
          %s808 = sshll.u32 %s804, 4
          %s809 = int_to_ptr.hbm [resolvable:$true] %s808
          %811 = dma.vmem_to_hbm [thread:$0]  %s807, 1024, %s809, %s791
        $region52: #{temporal_block_forward.1} parent=47 // pred_fallthru
          _
      $region48: #{temporal_block_forward.1} parent=5 // pred_fallthru
        _
      %p812 = scmp.le.s32.totalorder 2, %s16
      // Predicated region
      $region53: #{temporal_block_forward.1} parent=5 // pred_check
        %p813 = pneg %p812
      $region54: #{temporal_block_forward.1} parent=5 // pred_check_branch
        %815 = sbr.rel (%p813) target = $region56
      $region55: #{temporal_block_forward.1} parent=5 // pred_region
        %s816 = ssub.s32 %s16, 2
        // Predicated region
        $region57: #{temporal_block_forward.1} parent=55 // pred_check
          %p817 = pneg %p213
        $region58: #{temporal_block_forward.1} parent=55 // pred_check_branch
          %819 = sbr.rel (%p817) target = $region60
        $region59: #{temporal_block_forward.1} parent=55 // pred_region
          %s820 = sand.u32 %s198, 1
          %s821 = scalar_lea.sflag [#allocation3], %s820
          %s822 = sand.u32 %s198, 1
          %s823 = smul.addr %s822, 64
          %s824 = scalar_lea.vmem [#allocation2], %s823
          %826 = dma.done %s821, 1024
        $region60: #{temporal_block_forward.1} parent=55 // pred_fallthru
          _
      $region56: #{temporal_block_forward.1} parent=5 // pred_fallthru
        _
    $region6: #{temporal_block_forward.1} parent=1 // loop_footer
      %s20 = sadd.s32 1, %s16
    $region7: #{temporal_block_forward.1} parent=1 // loop_footer_branch
      %15 = sbr.rel target = $region3
    $region8: #{temporal_block_forward.1} parent=1 // loop_exit
      _
    %827 = vsyncpa [#allocation3], 1
    %s828 = scalar_lea.sflag [#allocation3], 1
    %829 = vsyncpa %s828, 1

</llo_original>
